<compile_context>
chip_gen: v6e
topology: v6e:2x2x1
jax: 0.10.0
libtpu: 0.0.40
codegen_flags: <defaults>
</compile_context>

<pallas_src>
import jax
import jax.numpy as jnp
from jax.experimental import pallas as pl
from jax.experimental.pallas import tpu as pltpu

_LANE = 128
_ROW_ALIGN = 16  # bf16 sublane-pair alignment for activation / output tiles


def _round_up(x, m):
    return (x + m - 1) // m * m


def _state_change_kernel(
    x_ref,      # [TB, KIN_PAD] bf16  [state | action | 1 | 0...] rows
    w_enc_ref,  # [KIN_PAD, H]  bf16  [w_se ; w_ae ; b_se+b_ae ; 0...]
    w_tr_ref,   # [H, H]        bf16
    b_tr_ref,   # [1, H]        f32
    w_sp_ref,   # [H, SP]       bf16  SP = state_dim padded to 128 lanes
    b_sp_ref,   # [1, SP]       f32
    out_ref,    # [TB, SP]      bf16  lane-dense state_change tile
):
    # enc = state_enc(state) + action_enc(action); biases folded into w_enc via
    # the ones column, so this is a single unmasked K=128 MXU pass.
    enc = jnp.dot(x_ref[...], w_enc_ref[...], preferred_element_type=jnp.float32)

    # transition = ReLU -> Linear(h, h) -> ReLU
    h1 = jnp.maximum(enc, 0.0).astype(jnp.bfloat16)
    h2 = (
        jnp.dot(h1, w_tr_ref[...], preferred_element_type=jnp.float32)
        + b_tr_ref[...]
    )
    h3 = jnp.maximum(h2, 0.0).astype(jnp.bfloat16)

    # state_pred(trans_enc) — 128 padded output columns, unmasked bf16 store.
    out = (
        jnp.dot(h3, w_sp_ref[...], preferred_element_type=jnp.float32)
        + b_sp_ref[...]
    )
    out_ref[...] = out.astype(out_ref.dtype)


def prepare_kernel_params(params):
    """One-time host-side prep: fuse + bias-fold encoder, pad, cast to bf16."""
    f32, bf16 = jnp.float32, jnp.bfloat16
    state_dim = params["w_sp"].shape[1]
    action_dim = params["w_ae"].shape[0]

    kin = state_dim + action_dim + 1            # +1 ones column (folded encoder bias)
    kin_pad = _round_up(kin, _LANE)             # 128: unmasked loads, canonical MXU K
    sp_pad = _round_up(state_dim, _LANE)        # 128: lane-dense unmasked stores

    # Fused encoder weight: [w_se ; w_ae ; b_se+b_ae] then zero-pad rows to 128.
    w_enc = jnp.concatenate(
        [params["w_se"], params["w_ae"], params["b_se"] + params["b_ae"]], axis=0
    )
    w_enc = jnp.pad(w_enc, ((0, kin_pad - kin), (0, 0))).astype(bf16)

    return {
        "w_enc": w_enc,
        "w_tr": params["w_tr"].astype(bf16),
        "b_tr": params["b_tr"].astype(f32),
        "w_sp": jnp.pad(params["w_sp"], ((0, 0), (0, sp_pad - state_dim))).astype(bf16),
        "b_sp": jnp.pad(params["b_sp"], ((0, 0), (0, sp_pad - state_dim))).astype(f32),
        "state_dim": state_dim,
        "action_dim": action_dim,
        "kin": kin,
        "kin_pad": kin_pad,
    }


def transition_state_change(state, action, kparams, *, batch_tile=1024,
                            min_grid_steps=4):
    """Pallas kernel for the state_change MLP.  Returns [B, state_dim] bfloat16."""
    B = state.shape[0]
    state_dim = kparams["state_dim"]
    kin = kparams["kin"]
    kin_pad = kparams["kin_pad"]
    H = kparams["w_tr"].shape[0]
    SP = kparams["w_sp"].shape[1]               # lane-padded output width (128)

    # Batch tile: derived from B (target >= min_grid_steps tiles so both v7x
    # TensorCores and double-buffering engage), 16-row aligned for bf16 tiles,
    # capped at batch_tile.  Padding waste is bounded (not up-to-2x).
    tb = min(batch_tile, _round_up(max(pl.cdiv(B, min_grid_steps), 1), _ROW_ALIGN))
    tb = max(tb, _ROW_ALIGN)
    b_pad = _round_up(B, tb)

    # Fused encoder input: [state | action | 1] cast once to bf16, zero-padded
    # to kin_pad lanes and b_pad rows (pad rows get 0 in the ones column; they
    # are sliced away below).
    x = jnp.concatenate(
        [state, action, jnp.ones((B, 1), state.dtype)], axis=1
    ).astype(jnp.bfloat16)
    x = jnp.pad(x, ((0, b_pad - B), (0, kin_pad - kin)))

    out = pl.pallas_call(
        _state_change_kernel,
        out_shape=jax.ShapeDtypeStruct((b_pad, SP), jnp.bfloat16),
        grid_spec=pltpu.PrefetchScalarGridSpec(
            num_scalar_prefetch=0,
            grid=(b_pad // tb,),
            in_specs=[
                pl.BlockSpec((tb, kin_pad), lambda i: (i, 0)),  # activations over batch
                pl.BlockSpec((kin_pad, H), lambda i: (0, 0)),   # weights pinned in VMEM
                pl.BlockSpec((H, H), lambda i: (0, 0)),
                pl.BlockSpec((1, H), lambda i: (0, 0)),
                pl.BlockSpec((H, SP), lambda i: (0, 0)),
                pl.BlockSpec((1, SP), lambda i: (0, 0)),
            ],
            out_specs=pl.BlockSpec((tb, SP), lambda i: (i, 0)),
        ),
        compiler_params=pltpu.CompilerParams(
            dimension_semantics=("parallel",),
        ),
    )(
        x,
        kparams["w_enc"],
        kparams["w_tr"], kparams["b_tr"],
        kparams["w_sp"], kparams["b_sp"],
    )
    # Pad region (extra rows / 124 zero-weight columns) is garbage-by-design;
    # slice back to the real batch and feature extent.
    return out[:B, :state_dim]


def transition_model_forward(state, action, params=None):
    """Matches PyTorch forward(): returns the input `state` unchanged.

    state_change is dead on this path, so no kernel is launched (saves the
    full HBM round trip and 3 matmuls that could never be DCE'd inside an
    opaque pallas_call).
    """
    del action, params
    return state


def _state_change_ref(state, action, params):
    """Pure-JAX reference mirroring the kernel's bf16/f32 mixed precision."""
    f32, bf16 = jnp.float32, jnp.bfloat16
    B = state.shape[0]
    x = jnp.concatenate(
        [state, action, jnp.ones((B, 1), state.dtype)], axis=1
    ).astype(bf16)
    w_enc = jnp.concatenate(
        [params["w_se"], params["w_ae"], params["b_se"] + params["b_ae"]], axis=0
    ).astype(bf16)
    enc = jnp.dot(x, w_enc, preferred_element_type=f32)
    h1 = jnp.maximum(enc, 0.0).astype(bf16)
    h2 = jnp.dot(h1, params["w_tr"].astype(bf16), preferred_element_type=f32) \
        + params["b_tr"].astype(f32)
    h3 = jnp.maximum(h2, 0.0).astype(bf16)
    out = jnp.dot(h3, params["w_sp"].astype(bf16), preferred_element_type=f32) \
        + params["b_sp"].astype(f32)
    return out.astype(bf16)


def init_params(key, state_dim=4, action_in_dim=1, h=256, dtype=jnp.float32):
    ks = jax.random.split(key, 8)
    scale = 0.05
    return {
        "w_se": scale * jax.random.normal(ks[0], (state_dim, h), dtype),
        "b_se": scale * jax.random.normal(ks[1], (1, h), dtype),
        "w_ae": scale * jax.random.normal(ks[2], (action_in_dim, h), dtype),
        "b_ae": scale * jax.random.normal(ks[3], (1, h), dtype),
        "w_tr": scale * jax.random.normal(ks[4], (h, h), dtype),
        "b_tr": scale * jax.random.normal(ks[5], (1, h), dtype),
        "w_sp": scale * jax.random.normal(ks[6], (h, state_dim), dtype),
        "b_sp": scale * jax.random.normal(ks[7], (1, state_dim), dtype),
    }


if __name__ == "__main__":
    key = jax.random.PRNGKey(0)
    k_param, k_state, k_action = jax.random.split(key, 3)

    B, state_dim, action_in_dim, h = 8, 4, 1, 256
    params = init_params(k_param, state_dim=state_dim, action_in_dim=action_in_dim, h=h)
    kparams = prepare_kernel_params(params)

    state = jax.random.normal(k_state, (B, state_dim), jnp.float32)
    # Categorical action encoded as a single float column (Linear(1, h) input).
    action = jax.random.randint(k_action, (B, 1), 0, 3).astype(jnp.float32)

    # forward() semantics: return input state unchanged (no kernel launch).
    out_state = transition_model_forward(state, action, params)
    assert out_state.shape == state.shape
    assert bool(jnp.allclose(out_state, state)), "forward() must return `state` unchanged"

    # Pallas kernel: state_change MLP hot path (what downstream training consumes).
    change = transition_state_change(state, action, kparams)
    change = jax.block_until_ready(change)
    assert change.shape == (B, state_dim)
    assert change.dtype == jnp.bfloat16

    # Check against a pure-JAX reference with matching mixed precision.
    ref = _state_change_ref(state, action, params)
    assert bool(jnp.allclose(change.astype(jnp.float32), ref.astype(jnp.float32),
                             rtol=2e-2, atol=2e-2)), "state_change mismatch vs reference"

    print("KERNEL_OK")
</pallas_src>

<mosaic_0001>
module attributes {stable_mosaic.version = 11 : i64} {
  func.func @_state_change_kernel(%arg0: i32, %arg1: memref<16x128xbf16, #tpu.memory_space<vmem>>, %arg2: memref<128x256xbf16, #tpu.memory_space<vmem>>, %arg3: memref<256x256xbf16, #tpu.memory_space<vmem>>, %arg4: memref<1x256xf32, #tpu.memory_space<vmem>>, %arg5: memref<256x128xbf16, #tpu.memory_space<vmem>>, %arg6: memref<1x128xf32, #tpu.memory_space<vmem>>, %arg7: memref<16x128xbf16, #tpu.memory_space<vmem>>) attributes {dimension_semantics = [#tpu.dimension_semantics<parallel>], iteration_bounds = array<i64: 1>, scalar_prefetch = 0 : i64, scratch_operands = 0 : i64, tpu.core_type = #tpu.core_type<tc>, window_params = [{transform_indices = @transform_0, window_bounds = array<i64: 16, 128>}, {pipeline_mode = #tpu.pipeline_mode<synchronous>, transform_indices = @transform_1, window_bounds = array<i64: 128, 256>}, {pipeline_mode = #tpu.pipeline_mode<synchronous>, transform_indices = @transform_2, window_bounds = array<i64: 256, 256>}, {pipeline_mode = #tpu.pipeline_mode<synchronous>, transform_indices = @transform_3, window_bounds = array<i64: 1, 256>}, {pipeline_mode = #tpu.pipeline_mode<synchronous>, transform_indices = @transform_4, window_bounds = array<i64: 256, 128>}, {pipeline_mode = #tpu.pipeline_mode<synchronous>, transform_indices = @transform_5, window_bounds = array<i64: 1, 128>}, {transform_indices = @transform_6, window_bounds = array<i64: 16, 128>}]} {
    %c0 = arith.constant 0 : index
    %c0_0 = arith.constant 0 : index
    %0 = vector.load %arg1[%c0, %c0_0] : memref<16x128xbf16, #tpu.memory_space<vmem>>, vector<16x128xbf16>
    %c0_1 = arith.constant 0 : index
    %c0_2 = arith.constant 0 : index
    %1 = vector.load %arg2[%c0_1, %c0_2] : memref<128x256xbf16, #tpu.memory_space<vmem>>, vector<128x256xbf16>
    %cst = arith.constant dense<0.000000e+00> : vector<16x256xf32>
    %2 = tpu.matmul %0, %1, %cst {dimension_numbers = #tpu.dot_dimension_numbers<[1], [0], [0], [1], [0, 0, 1, 1], [], []>} : vector<16x128xbf16>, vector<128x256xbf16>, vector<16x256xf32> -> vector<16x256xf32>
    %cst_3 = arith.constant 0.000000e+00 : f32
    %3 = vector.broadcast %cst_3 : f32 to vector<16x256xf32>
    %4 = arith.maximumf %2, %3 : vector<16x256xf32>
    %5 = arith.truncf %4 : vector<16x256xf32> to vector<16x256xbf16>
    %c0_4 = arith.constant 0 : index
    %c0_5 = arith.constant 0 : index
    %6 = vector.load %arg3[%c0_4, %c0_5] : memref<256x256xbf16, #tpu.memory_space<vmem>>, vector<256x256xbf16>
    %cst_6 = arith.constant dense<0.000000e+00> : vector<16x256xf32>
    %7 = tpu.matmul %5, %6, %cst_6 {dimension_numbers = #tpu.dot_dimension_numbers<[1], [0], [0], [1], [0, 0, 1, 1], [], []>} : vector<16x256xbf16>, vector<256x256xbf16>, vector<16x256xf32> -> vector<16x256xf32>
    %c0_7 = arith.constant 0 : index
    %c0_8 = arith.constant 0 : index
    %8 = vector.load %arg4[%c0_7, %c0_8] : memref<1x256xf32, #tpu.memory_space<vmem>>, vector<1x256xf32>
    %9 = vector.broadcast %8 : vector<1x256xf32> to vector<16x256xf32>
    %10 = arith.addf %7, %9 : vector<16x256xf32>
    %cst_9 = arith.constant 0.000000e+00 : f32
    %11 = vector.broadcast %cst_9 : f32 to vector<16x256xf32>
    %12 = arith.maximumf %10, %11 : vector<16x256xf32>
    %13 = arith.truncf %12 : vector<16x256xf32> to vector<16x256xbf16>
    %c0_10 = arith.constant 0 : index
    %c0_11 = arith.constant 0 : index
    %14 = vector.load %arg5[%c0_10, %c0_11] : memref<256x128xbf16, #tpu.memory_space<vmem>>, vector<256x128xbf16>
    %cst_12 = arith.constant dense<0.000000e+00> : vector<16x128xf32>
    %15 = tpu.matmul %13, %14, %cst_12 {dimension_numbers = #tpu.dot_dimension_numbers<[1], [0], [0], [1], [0, 0, 1, 1], [], []>} : vector<16x256xbf16>, vector<256x128xbf16>, vector<16x128xf32> -> vector<16x128xf32>
    %c0_13 = arith.constant 0 : index
    %c0_14 = arith.constant 0 : index
    %16 = vector.load %arg6[%c0_13, %c0_14] : memref<1x128xf32, #tpu.memory_space<vmem>>, vector<1x128xf32>
    %17 = vector.broadcast %16 : vector<1x128xf32> to vector<16x128xf32>
    %18 = arith.addf %15, %17 : vector<16x128xf32>
    %19 = arith.truncf %18 : vector<16x128xf32> to vector<16x128xbf16>
    %c0_15 = arith.constant 0 : index
    %c0_16 = arith.constant 0 : index
    %20 = vector.load %arg7[%c0_15, %c0_16] : memref<16x128xbf16, #tpu.memory_space<vmem>>, vector<16x128xbf16>
    tpu.vector_store %arg7[%c0_15, %c0_16], %19 {strides = array<i32>} : memref<16x128xbf16, #tpu.memory_space<vmem>>, vector<16x128xbf16>,
    return
  }
  func.func @transform_0(%arg0: i32) -> (i32, i32) {
    %c0_i32 = arith.constant 0 : i32
    %c0_i32_0 = arith.constant 0 : i32
    return %arg0, %c0_i32 : i32, i32
  }
  func.func @transform_1(%arg0: i32) -> (i32, i32) {
    %c0_i32 = arith.constant 0 : i32
    %c0_i32_0 = arith.constant 0 : i32
    %c0_i32_1 = arith.constant 0 : i32
    return %c0_i32, %c0_i32_0 : i32, i32
  }
  func.func @transform_2(%arg0: i32) -> (i32, i32) {
    %c0_i32 = arith.constant 0 : i32
    %c0_i32_0 = arith.constant 0 : i32
    %c0_i32_1 = arith.constant 0 : i32
    return %c0_i32, %c0_i32_0 : i32, i32
  }
  func.func @transform_3(%arg0: i32) -> (i32, i32) {
    %c0_i32 = arith.constant 0 : i32
    %c0_i32_0 = arith.constant 0 : i32
    %c0_i32_1 = arith.constant 0 : i32
    return %c0_i32, %c0_i32_0 : i32, i32
  }
  func.func @transform_4(%arg0: i32) -> (i32, i32) {
    %c0_i32 = arith.constant 0 : i32
    %c0_i32_0 = arith.constant 0 : i32
    %c0_i32_1 = arith.constant 0 : i32
    return %c0_i32, %c0_i32_0 : i32, i32
  }
  func.func @transform_5(%arg0: i32) -> (i32, i32) {
    %c0_i32 = arith.constant 0 : i32
    %c0_i32_0 = arith.constant 0 : i32
    %c0_i32_1 = arith.constant 0 : i32
    return %c0_i32, %c0_i32_0 : i32, i32
  }
  func.func @transform_6(%arg0: i32) -> (i32, i32) {
    %c0_i32 = arith.constant 0 : i32
    %c0_i32_0 = arith.constant 0 : i32
    return %arg0, %c0_i32 : i32, i32
  }
}

</mosaic_0001>

<llo_original>
// kernel: tpu_custom_call.1
$region0: #{tpu_custom_call.1}
  #allocation0 [shape = 'u32[]', space=smem, size = 0x4, offset = 0x4, fixed_abs, tag = 'smem constant byte address 0x4 - core index']
  #allocation1 [shape = 'u32[144,128]{1,0:T(1,128)}', space=vmem, size = 0x12000, scoped, tag = 'internal scratch']
  %s0 = inlined_call_operand.hbm [shape: bf16[16,128], index: 0, kind: input, shape index: {}]
  %s1 = inlined_call_operand.hbm [shape: bf16[128,256], index: 1, kind: input, shape index: {}]
  %s2 = inlined_call_operand.hbm [shape: bf16[256,256], index: 2, kind: input, shape index: {}]
  %s3 = inlined_call_operand.vmem [shape: f32[1,256], index: 3, kind: input, shape index: {}]
  %s4 = inlined_call_operand.hbm [shape: bf16[256,128], index: 4, kind: input, shape index: {}]
  %s5 = inlined_call_operand.vmem [shape: f32[1,128], index: 5, kind: input, shape index: {}]
  %s6 = inlined_call_operand.hbm [shape: bf16[16,128], index: 6, kind: output, shape index: {}]
  %s7 = sld [smem:[#allocation0]]
  $region50: #{tpu_custom_call.1} parent=0
    _
  %s9 = ssub.s32 1, %s7
  %s10 = scalar_select 0, %s9, %s7
  $region1: #{tpu_custom_call.1} parent=0
    #allocation2 [shape = 'u8[4096]{0}', space=vmem, size = 0x1000, scoped, tag = 'input window, operand 0, single buffered']
    #allocation3 [shape = 's32[1]{0}', space=sflag, size = 0x4, scoped, tag = 'scoped memory for tpu_custom_call.1']
    #allocation4 [shape = 's32[1]{0}', space=sflag, size = 0x4, scoped, tag = 'scoped memory for tpu_custom_call.1']
    #allocation5 [shape = 'u8[65536]{0}', space=vmem, size = 0x10000, scoped, tag = 'input window, operand 1, single buffered']
    #allocation6 [shape = 's32[1]{0}', space=sflag, size = 0x4, scoped, tag = 'scoped memory for tpu_custom_call.1']
    #allocation7 [shape = 'u8[131072]{0}', space=vmem, size = 0x20000, scoped, tag = 'input window, operand 2, single buffered']
    #allocation8 [shape = 'u8[65536]{0}', space=vmem, size = 0x10000, scoped, tag = 'input window, operand 4, single buffered']
    #allocation9 [shape = 's32[1]{0}', space=sflag, size = 0x4, scoped, tag = 'scoped memory for tpu_custom_call.1']
    #allocation10 [shape = 'u8[4096]{0}', space=vmem, size = 0x1000, scoped, tag = 'output window, operand 0, single buffered']
    %11 = vsyncpa [#allocation3], 0
    %12 = vsyncpa [#allocation6], 0
    %13 = vsyncpa [#allocation9], 0
    %14 = vsyncpa [#allocation4], 0
    // Predicated region
    $region2: #{tpu_custom_call.1} parent=1 // pred_check
      _
    $region3: #{tpu_custom_call.1} parent=1 // pred_check_branch
      %16 = sbr.rel (0) target = $region5
    $region4: #{tpu_custom_call.1} parent=1 // pred_region
      %s18 = ssub.s32 128, 128
      %19 = vsyncadd [#allocation3], %s18
      %s20 = sshll.u32 [#allocation2], 4
      %s21 = int_to_ptr.vmem [resolvable:$true] %s20
      %26 = dma.hbm_to_vmem [thread:$0]  %s0, 128, %s21, [#allocation3], 64, 64, 4
    $region5: #{tpu_custom_call.1} parent=1 // pred_fallthru
      _
    // Predicated region
    $region6: #{tpu_custom_call.1} parent=1 // pred_check
      _
    $region7: #{tpu_custom_call.1} parent=1 // pred_check_branch
      %28 = sbr.rel (0) target = $region9
    $region8: #{tpu_custom_call.1} parent=1 // pred_region
      %s30 = ssub.s32 2048, 2048
      %31 = vsyncadd [#allocation6], %s30
      %s32 = sshll.u32 [#allocation5], 4
      %s33 = int_to_ptr.vmem [resolvable:$true] %s32
      %38 = dma.hbm_to_vmem [thread:$0]  %s1, 2048, %s33, [#allocation6], 128, 128, 8
    $region9: #{tpu_custom_call.1} parent=1 // pred_fallthru
      _
    // Predicated region
    $region10: #{tpu_custom_call.1} parent=1 // pred_check
      _
    $region11: #{tpu_custom_call.1} parent=1 // pred_check_branch
      %40 = sbr.rel (0) target = $region13
    $region12: #{tpu_custom_call.1} parent=1 // pred_region
      %s42 = ssub.s32 4096, 4096
      %43 = vsyncadd [#allocation6], %s42
      %s44 = sshll.u32 [#allocation7], 4
      %s45 = int_to_ptr.vmem [resolvable:$true] %s44
      %50 = dma.hbm_to_vmem [thread:$0]  %s2, 4096, %s45, [#allocation6], 128, 128, 8
    $region13: #{tpu_custom_call.1} parent=1 // pred_fallthru
      _
    // Predicated region
    $region14: #{tpu_custom_call.1} parent=1 // pred_check
      _
    $region15: #{tpu_custom_call.1} parent=1 // pred_check_branch
      %52 = sbr.rel (0) target = $region17
    $region16: #{tpu_custom_call.1} parent=1 // pred_region
      _
    $region17: #{tpu_custom_call.1} parent=1 // pred_fallthru
      _
    // Predicated region
    $region18: #{tpu_custom_call.1} parent=1 // pred_check
      _
    $region19: #{tpu_custom_call.1} parent=1 // pred_check_branch
      %54 = sbr.rel (0) target = $region21
    $region20: #{tpu_custom_call.1} parent=1 // pred_region
      %s56 = ssub.s32 2048, 2048
      %57 = vsyncadd [#allocation9], %s56
      %s58 = sshll.u32 [#allocation8], 4
      %s59 = int_to_ptr.vmem [resolvable:$true] %s58
      %64 = dma.hbm_to_vmem [thread:$0]  %s4, 2048, %s59, [#allocation9], 64, 64, 4
    $region21: #{tpu_custom_call.1} parent=1 // pred_fallthru
      _
    // Predicated region
    $region22: #{tpu_custom_call.1} parent=1 // pred_check
      _
    $region23: #{tpu_custom_call.1} parent=1 // pred_check_branch
      %66 = sbr.rel (0) target = $region25
    $region24: #{tpu_custom_call.1} parent=1 // pred_region
      _
    $region25: #{tpu_custom_call.1} parent=1 // pred_fallthru
      _
    // Predicated region
    $region26: #{tpu_custom_call.1} parent=1 // pred_check
      _
    $region27: #{tpu_custom_call.1} parent=1 // pred_check_branch
      %68 = sbr.rel (0) target = $region29
    $region28: #{tpu_custom_call.1} parent=1 // pred_region
      %69 = dma.done [#allocation3], 128
    $region29: #{tpu_custom_call.1} parent=1 // pred_fallthru
      _
    // Predicated region
    $region30: #{tpu_custom_call.1} parent=1 // pred_check
      _
    $region31: #{tpu_custom_call.1} parent=1 // pred_check_branch
      %71 = sbr.rel (0) target = $region33
    $region32: #{tpu_custom_call.1} parent=1 // pred_region
      %72 = dma.done [#allocation6], 2048
    $region33: #{tpu_custom_call.1} parent=1 // pred_fallthru
      _
    // Predicated region
    $region34: #{tpu_custom_call.1} parent=1 // pred_check
      _
    $region35: #{tpu_custom_call.1} parent=1 // pred_check_branch
      %74 = sbr.rel (0) target = $region37
    $region36: #{tpu_custom_call.1} parent=1 // pred_region
      %75 = dma.done [#allocation6], 4096
    $region37: #{tpu_custom_call.1} parent=1 // pred_fallthru
      _
    // Predicated region
    $region38: #{tpu_custom_call.1} parent=1 // pred_check
      _
    $region39: #{tpu_custom_call.1} parent=1 // pred_check_branch
      %77 = sbr.rel (0) target = $region41
    $region40: #{tpu_custom_call.1} parent=1 // pred_region
      %78 = dma.done [#allocation9], 2048
    $region41: #{tpu_custom_call.1} parent=1 // pred_fallthru
      _
    %v80 = vld [vmem:[#allocation2] sm:$0xf]
    %v81 = vld [vmem:[#allocation2 + $0x4] sm:$0xf]
    %v82 = vld [vmem:[#allocation5] sm:$0xff]
    %v83 = vld [vmem:[#allocation5 + $0x8] sm:$0xff]
    %v84 = vld [vmem:[#allocation5 + $0x10] sm:$0xff]
    %v85 = vld [vmem:[#allocation5 + $0x18] sm:$0xff]
    %v86 = vld [vmem:[#allocation5 + $0x20] sm:$0xff]
    %v87 = vld [vmem:[#allocation5 + $0x28] sm:$0xff]
    %v88 = vld [vmem:[#allocation5 + $0x30] sm:$0xff]
    %v89 = vld [vmem:[#allocation5 + $0x38] sm:$0xff]
    %v90 = vld [vmem:[#allocation5 + $0x40] sm:$0xff]
    %v91 = vld [vmem:[#allocation5 + $0x48] sm:$0xff]
    %v92 = vld [vmem:[#allocation5 + $0x50] sm:$0xff]
    %v93 = vld [vmem:[#allocation5 + $0x58] sm:$0xff]
    %v94 = vld [vmem:[#allocation5 + $0x60] sm:$0xff]
    %v95 = vld [vmem:[#allocation5 + $0x68] sm:$0xff]
    %v96 = vld [vmem:[#allocation5 + $0x70] sm:$0xff]
    %v97 = vld [vmem:[#allocation5 + $0x78] sm:$0xff]
    %v100 = vunpack.c.l.b16 %v80
    %v101 = vunpack.c.l.b16 %v81
    %v102 = vpack.c.b16 %v101, %v100
    %v120 = vunpack.c.l.b16 %v82
    %v121 = vunpack.c.h.b16 %v82
    %v122 = vunpack.c.l.b16 %v83
    %v123 = vunpack.c.h.b16 %v83
    %v124 = vunpack.c.l.b16 %v84
    %v125 = vunpack.c.h.b16 %v84
    %v126 = vunpack.c.l.b16 %v85
    %v127 = vunpack.c.h.b16 %v85
    %v128 = vunpack.c.l.b16 %v86
    %v129 = vunpack.c.h.b16 %v86
    %v130 = vunpack.c.l.b16 %v87
    %v131 = vunpack.c.h.b16 %v87
    %v132 = vunpack.c.l.b16 %v88
    %v133 = vunpack.c.h.b16 %v88
    %v134 = vunpack.c.l.b16 %v89
    %v135 = vunpack.c.h.b16 %v89
    %v136 = vunpack.c.l.b16 %v90
    %v137 = vunpack.c.h.b16 %v90
    %v138 = vunpack.c.l.b16 %v91
    %v139 = vunpack.c.h.b16 %v91
    %v140 = vunpack.c.l.b16 %v92
    %v141 = vunpack.c.h.b16 %v92
    %v142 = vunpack.c.l.b16 %v93
    %v143 = vunpack.c.h.b16 %v93
    %v144 = vunpack.c.l.b16 %v94
    %v145 = vunpack.c.h.b16 %v94
    %v146 = vunpack.c.l.b16 %v95
    %v147 = vunpack.c.h.b16 %v95
    %v148 = vunpack.c.l.b16 %v96
    %v149 = vunpack.c.h.b16 %v96
    %v150 = vunpack.c.l.b16 %v97
    %v151 = vunpack.c.h.b16 %v97
    %v152 = vpack.c.b16 %v122, %v120
    %v153 = vpack.c.b16 %v123, %v121
    %v154 = vpack.c.b16 %v126, %v124
    %v155 = vpack.c.b16 %v127, %v125
    %v156 = vpack.c.b16 %v130, %v128
    %v157 = vpack.c.b16 %v131, %v129
    %v158 = vpack.c.b16 %v134, %v132
    %v159 = vpack.c.b16 %v135, %v133
    %v160 = vpack.c.b16 %v138, %v136
    %v161 = vpack.c.b16 %v139, %v137
    %v162 = vpack.c.b16 %v142, %v140
    %v163 = vpack.c.b16 %v143, %v141
    %v164 = vpack.c.b16 %v146, %v144
    %v165 = vpack.c.b16 %v147, %v145
    %v166 = vpack.c.b16 %v150, %v148
    %v167 = vpack.c.b16 %v151, %v149
    %184 = vmatprep.subr.bf16.mxu0 %v167
    %185 = vmatpush1.bf16.msra.mxu0 %v166
    %186 = vmatprep.subr.bf16.mxu0 %v165
    %187 = vmatpush1.bf16.msra.mxu0 %v164
    %188 = vmatprep.subr.bf16.mxu0 %v163
    %189 = vmatpush1.bf16.msra.mxu0 %v162
    %190 = vmatprep.subr.bf16.mxu0 %v161
    %191 = vmatpush1.bf16.msra.mxu0 %v160
    %192 = vmatprep.subr.bf16.mxu0 %v159
    %193 = vmatpush1.bf16.msra.mxu0 %v158
    %194 = vmatprep.subr.bf16.mxu0 %v157
    %195 = vmatpush1.bf16.msra.mxu0 %v156
    %196 = vmatprep.subr.bf16.mxu0 %v155
    %197 = vmatpush1.bf16.msra.mxu0 %v154
    %198 = vmatprep.subr.bf16.mxu0 %v153
    %199 = vmatpush1.bf16.msra.mxu0 %v152
    %200 = vmatprep.subr.bf16.mxu0 0
    %201 = vmatpush2.bf16.msra.mxu0 0
    %202 = vmatprep.subr.bf16.mxu0 0
    %203 = vmatpush2.bf16.msra.mxu0 0
    %204 = vmatprep.subr.bf16.mxu0 0
    %205 = vmatpush2.bf16.msra.mxu0 0
    %206 = vmatprep.subr.bf16.mxu0 0
    %207 = vmatpush2.bf16.msra.mxu0 0
    %208 = vmatprep.subr.bf16.mxu0 0
    %209 = vmatpush2.bf16.msra.mxu0 0
    %210 = vmatprep.subr.bf16.mxu0 0
    %211 = vmatpush2.bf16.msra.mxu0 0
    %212 = vmatprep.subr.bf16.mxu0 0
    %213 = vmatpush2.bf16.msra.mxu0 0
    %214 = vmatprep.subr.bf16.mxu0 0
    %215 = vmatpush2.bf16.msra.mxu0 0
    %216 = vmatprep.mubr.bf16.mxu0 0
    %217 = vmatmul.mubr.bf16.gmra.mxu0 %v102
    %v218 = vpop.f32.mrf.mxu0
    %v219 = vadd.f32 0.0, %v218
    %v220 = vpop.f32.mrf.mxu0
    %v221 = vadd.f32 0.0, %v220
    %v222 = vpop.f32.mrf.mxu0
    %v223 = vadd.f32 0.0, %v222
    %v224 = vpop.f32.mrf.mxu0
    %v225 = vadd.f32 0.0, %v224
    %226 = vdwg.mxu0
    %v227 = vmax.f32 %v219, 0.0
    %v228 = vmax.f32 %v221, 0.0
    %v229 = vmax.f32 %v223, 0.0
    %v230 = vmax.f32 %v225, 0.0
    %v231 = vpack.c.bf16 %v229, %v227
    %v232 = vpack.c.bf16 %v230, %v228
    %v233 = vld [vmem:[#allocation7] sm:$0xff]
    %v234 = vld [vmem:[#allocation7 + $0x8] sm:$0xff]
    %v235 = vld [vmem:[#allocation7 + $0x10] sm:$0xff]
    %v236 = vld [vmem:[#allocation7 + $0x18] sm:$0xff]
    %v237 = vld [vmem:[#allocation7 + $0x20] sm:$0xff]
    %v238 = vld [vmem:[#allocation7 + $0x28] sm:$0xff]
    %v239 = vld [vmem:[#allocation7 + $0x30] sm:$0xff]
    %v240 = vld [vmem:[#allocation7 + $0x38] sm:$0xff]
    %v241 = vld [vmem:[#allocation7 + $0x40] sm:$0xff]
    %v242 = vld [vmem:[#allocation7 + $0x48] sm:$0xff]
    %v243 = vld [vmem:[#allocation7 + $0x50] sm:$0xff]
    %v244 = vld [vmem:[#allocation7 + $0x58] sm:$0xff]
    %v245 = vld [vmem:[#allocation7 + $0x60] sm:$0xff]
    %v246 = vld [vmem:[#allocation7 + $0x68] sm:$0xff]
    %v247 = vld [vmem:[#allocation7 + $0x70] sm:$0xff]
    %v248 = vld [vmem:[#allocation7 + $0x78] sm:$0xff]
    %v249 = vld [vmem:[#allocation7 + $0x80] sm:$0xff]
    %v250 = vld [vmem:[#allocation7 + $0x88] sm:$0xff]
    %v251 = vld [vmem:[#allocation7 + $0x90] sm:$0xff]
    %v252 = vld [vmem:[#allocation7 + $0x98] sm:$0xff]
    %v253 = vld [vmem:[#allocation7 + $0xa0] sm:$0xff]
    %v254 = vld [vmem:[#allocation7 + $0xa8] sm:$0xff]
    %v255 = vld [vmem:[#allocation7 + $0xb0] sm:$0xff]
    %v256 = vld [vmem:[#allocation7 + $0xb8] sm:$0xff]
    %v257 = vld [vmem:[#allocation7 + $0xc0] sm:$0xff]
    %v258 = vld [vmem:[#allocation7 + $0xc8] sm:$0xff]
    %v259 = vld [vmem:[#allocation7 + $0xd0] sm:$0xff]
    %v260 = vld [vmem:[#allocation7 + $0xd8] sm:$0xff]
    %v261 = vld [vmem:[#allocation7 + $0xe0] sm:$0xff]
    %v262 = vld [vmem:[#allocation7 + $0xe8] sm:$0xff]
    %v263 = vld [vmem:[#allocation7 + $0xf0] sm:$0xff]
    %v264 = vld [vmem:[#allocation7 + $0xf8] sm:$0xff]
    %v265 = vld [vmem:[%s3] sm:$0x3]
    %v267 = vlaneseq
    %v268 = vshrl.u32 %v267, 7
    %v269 = vsub.s32 0, %v268
    %v270 = vrot.slane %v265, %v269
    %v271 = vlaneseq
    %v272 = vshrl.u32 %v271, 7
    %v273 = vsub.s32 1, %v272
    %v274 = vrot.slane %v265, %v273
    %v309 = vunpack.c.l.b16 %v233
    %v310 = vunpack.c.h.b16 %v233
    %v311 = vunpack.c.l.b16 %v234
    %v312 = vunpack.c.h.b16 %v234
    %v313 = vunpack.c.l.b16 %v235
    %v314 = vunpack.c.h.b16 %v235
    %v315 = vunpack.c.l.b16 %v236
    %v316 = vunpack.c.h.b16 %v236
    %v317 = vunpack.c.l.b16 %v237
    %v318 = vunpack.c.h.b16 %v237
    %v319 = vunpack.c.l.b16 %v238
    %v320 = vunpack.c.h.b16 %v238
    %v321 = vunpack.c.l.b16 %v239
    %v322 = vunpack.c.h.b16 %v239
    %v323 = vunpack.c.l.b16 %v240
    %v324 = vunpack.c.h.b16 %v240
    %v325 = vunpack.c.l.b16 %v241
    %v326 = vunpack.c.h.b16 %v241
    %v327 = vunpack.c.l.b16 %v242
    %v328 = vunpack.c.h.b16 %v242
    %v329 = vunpack.c.l.b16 %v243
    %v330 = vunpack.c.h.b16 %v243
    %v331 = vunpack.c.l.b16 %v244
    %v332 = vunpack.c.h.b16 %v244
    %v333 = vunpack.c.l.b16 %v245
    %v334 = vunpack.c.h.b16 %v245
    %v335 = vunpack.c.l.b16 %v246
    %v336 = vunpack.c.h.b16 %v246
    %v337 = vunpack.c.l.b16 %v247
    %v338 = vunpack.c.h.b16 %v247
    %v339 = vunpack.c.l.b16 %v248
    %v340 = vunpack.c.h.b16 %v248
    %v341 = vunpack.c.l.b16 %v249
    %v342 = vunpack.c.h.b16 %v249
    %v343 = vunpack.c.l.b16 %v250
    %v344 = vunpack.c.h.b16 %v250
    %v345 = vunpack.c.l.b16 %v251
    %v346 = vunpack.c.h.b16 %v251
    %v347 = vunpack.c.l.b16 %v252
    %v348 = vunpack.c.h.b16 %v252
    %v349 = vunpack.c.l.b16 %v253
    %v350 = vunpack.c.h.b16 %v253
    %v351 = vunpack.c.l.b16 %v254
    %v352 = vunpack.c.h.b16 %v254
    %v353 = vunpack.c.l.b16 %v255
    %v354 = vunpack.c.h.b16 %v255
    %v355 = vunpack.c.l.b16 %v256
    %v356 = vunpack.c.h.b16 %v256
    %v357 = vunpack.c.l.b16 %v257
    %v358 = vunpack.c.h.b16 %v257
    %v359 = vunpack.c.l.b16 %v258
    %v360 = vunpack.c.h.b16 %v258
    %v361 = vunpack.c.l.b16 %v259
    %v362 = vunpack.c.h.b16 %v259
    %v363 = vunpack.c.l.b16 %v260
    %v364 = vunpack.c.h.b16 %v260
    %v365 = vunpack.c.l.b16 %v261
    %v366 = vunpack.c.h.b16 %v261
    %v367 = vunpack.c.l.b16 %v262
    %v368 = vunpack.c.h.b16 %v262
    %v369 = vunpack.c.l.b16 %v263
    %v370 = vunpack.c.h.b16 %v263
    %v371 = vunpack.c.l.b16 %v264
    %v372 = vunpack.c.h.b16 %v264
    %v373 = vpack.c.b16 %v311, %v309
    %v374 = vpack.c.b16 %v312, %v310
    %v375 = vpack.c.b16 %v315, %v313
    %v376 = vpack.c.b16 %v316, %v314
    %v377 = vpack.c.b16 %v319, %v317
    %v378 = vpack.c.b16 %v320, %v318
    %v379 = vpack.c.b16 %v323, %v321
    %v380 = vpack.c.b16 %v324, %v322
    %v381 = vpack.c.b16 %v327, %v325
    %v382 = vpack.c.b16 %v328, %v326
    %v383 = vpack.c.b16 %v331, %v329
    %v384 = vpack.c.b16 %v332, %v330
    %v385 = vpack.c.b16 %v335, %v333
    %v386 = vpack.c.b16 %v336, %v334
    %v387 = vpack.c.b16 %v339, %v337
    %v388 = vpack.c.b16 %v340, %v338
    %v389 = vpack.c.b16 %v343, %v341
    %v390 = vpack.c.b16 %v344, %v342
    %v391 = vpack.c.b16 %v347, %v345
    %v392 = vpack.c.b16 %v348, %v346
    %v393 = vpack.c.b16 %v351, %v349
    %v394 = vpack.c.b16 %v352, %v350
    %v395 = vpack.c.b16 %v355, %v353
    %v396 = vpack.c.b16 %v356, %v354
    %v397 = vpack.c.b16 %v359, %v357
    %v398 = vpack.c.b16 %v360, %v358
    %v399 = vpack.c.b16 %v363, %v361
    %v400 = vpack.c.b16 %v364, %v362
    %v401 = vpack.c.b16 %v367, %v365
    %v402 = vpack.c.b16 %v368, %v366
    %v403 = vpack.c.b16 %v371, %v369
    %v404 = vpack.c.b16 %v372, %v370
    %437 = vmatprep.subr.bf16.mxu0 %v388
    %438 = vmatpush1.bf16.msra.mxu0 %v387
    %439 = vmatprep.subr.bf16.mxu0 %v386
    %440 = vmatpush1.bf16.msra.mxu0 %v385
    %441 = vmatprep.subr.bf16.mxu0 %v384
    %442 = vmatpush1.bf16.msra.mxu0 %v383
    %443 = vmatprep.subr.bf16.mxu0 %v382
    %444 = vmatpush1.bf16.msra.mxu0 %v381
    %445 = vmatprep.subr.bf16.mxu0 %v380
    %446 = vmatpush1.bf16.msra.mxu0 %v379
    %447 = vmatprep.subr.bf16.mxu0 %v378
    %448 = vmatpush1.bf16.msra.mxu0 %v377
    %449 = vmatprep.subr.bf16.mxu0 %v376
    %450 = vmatpush1.bf16.msra.mxu0 %v375
    %451 = vmatprep.subr.bf16.mxu0 %v374
    %452 = vmatpush1.bf16.msra.mxu0 %v373
    %453 = vmatprep.subr.bf16.mxu0 %v404
    %454 = vmatpush2.bf16.msra.mxu0 %v403
    %455 = vmatprep.subr.bf16.mxu0 %v402
    %456 = vmatpush2.bf16.msra.mxu0 %v401
    %457 = vmatprep.subr.bf16.mxu0 %v400
    %458 = vmatpush2.bf16.msra.mxu0 %v399
    %459 = vmatprep.subr.bf16.mxu0 %v398
    %460 = vmatpush2.bf16.msra.mxu0 %v397
    %461 = vmatprep.subr.bf16.mxu0 %v396
    %462 = vmatpush2.bf16.msra.mxu0 %v395
    %463 = vmatprep.subr.bf16.mxu0 %v394
    %464 = vmatpush2.bf16.msra.mxu0 %v393
    %465 = vmatprep.subr.bf16.mxu0 %v392
    %466 = vmatpush2.bf16.msra.mxu0 %v391
    %467 = vmatprep.subr.bf16.mxu0 %v390
    %468 = vmatpush2.bf16.msra.mxu0 %v389
    %469 = vmatprep.mubr.bf16.mxu0 %v232
    %470 = vmatmul.mubr.bf16.gmra.mxu0 %v231
    %v471 = vpop.f32.mrf.mxu0
    %v472 = vadd.f32 %v270, %v471
    %v473 = vpop.f32.mrf.mxu0
    %v474 = vadd.f32 %v274, %v473
    %v475 = vpop.f32.mrf.mxu0
    %v476 = vadd.f32 %v270, %v475
    %v477 = vpop.f32.mrf.mxu0
    %v478 = vadd.f32 %v274, %v477
    %479 = vdwg.mxu0
    %v480 = vmax.f32 %v472, 0.0
    %v481 = vmax.f32 %v474, 0.0
    %v482 = vmax.f32 %v476, 0.0
    %v483 = vmax.f32 %v478, 0.0
    %v484 = vpack.c.bf16 %v482, %v480
    %v485 = vpack.c.bf16 %v483, %v481
    %v486 = vld [vmem:[#allocation8] sm:$0xf]
    %v487 = vld [vmem:[#allocation8 + $0x4] sm:$0xf]
    %v488 = vld [vmem:[#allocation8 + $0x8] sm:$0xf]
    %v489 = vld [vmem:[#allocation8 + $0xc] sm:$0xf]
    %v490 = vld [vmem:[#allocation8 + $0x10] sm:$0xf]
    %v491 = vld [vmem:[#allocation8 + $0x14] sm:$0xf]
    %v492 = vld [vmem:[#allocation8 + $0x18] sm:$0xf]
    %v493 = vld [vmem:[#allocation8 + $0x1c] sm:$0xf]
    %v494 = vld [vmem:[#allocation8 + $0x20] sm:$0xf]
    %v495 = vld [vmem:[#allocation8 + $0x24] sm:$0xf]
    %v496 = vld [vmem:[#allocation8 + $0x28] sm:$0xf]
    %v497 = vld [vmem:[#allocation8 + $0x2c] sm:$0xf]
    %v498 = vld [vmem:[#allocation8 + $0x30] sm:$0xf]
    %v499 = vld [vmem:[#allocation8 + $0x34] sm:$0xf]
    %v500 = vld [vmem:[#allocation8 + $0x38] sm:$0xf]
    %v501 = vld [vmem:[#allocation8 + $0x3c] sm:$0xf]
    %v502 = vld [vmem:[#allocation8 + $0x40] sm:$0xf]
    %v503 = vld [vmem:[#allocation8 + $0x44] sm:$0xf]
    %v504 = vld [vmem:[#allocation8 + $0x48] sm:$0xf]
    %v505 = vld [vmem:[#allocation8 + $0x4c] sm:$0xf]
    %v506 = vld [vmem:[#allocation8 + $0x50] sm:$0xf]
    %v507 = vld [vmem:[#allocation8 + $0x54] sm:$0xf]
    %v508 = vld [vmem:[#allocation8 + $0x58] sm:$0xf]
    %v509 = vld [vmem:[#allocation8 + $0x5c] sm:$0xf]
    %v510 = vld [vmem:[#allocation8 + $0x60] sm:$0xf]
    %v511 = vld [vmem:[#allocation8 + $0x64] sm:$0xf]
    %v512 = vld [vmem:[#allocation8 + $0x68] sm:$0xf]
    %v513 = vld [vmem:[#allocation8 + $0x6c] sm:$0xf]
    %v514 = vld [vmem:[#allocation8 + $0x70] sm:$0xf]
    %v515 = vld [vmem:[#allocation8 + $0x74] sm:$0xf]
    %v516 = vld [vmem:[#allocation8 + $0x78] sm:$0xf]
    %v517 = vld [vmem:[#allocation8 + $0x7c] sm:$0xf]
    %v518 = vld [vmem:[%s5] sm:$0x1]
    %v520 = vlaneseq
    %v521 = vshrl.u32 %v520, 7
    %v522 = vsub.s32 0, %v521
    %v523 = vrot.slane %v518, %v522
    %v557 = vunpack.c.l.b16 %v486
    %v558 = vunpack.c.l.b16 %v487
    %v559 = vunpack.c.l.b16 %v488
    %v560 = vunpack.c.l.b16 %v489
    %v561 = vunpack.c.l.b16 %v490
    %v562 = vunpack.c.l.b16 %v491
    %v563 = vunpack.c.l.b16 %v492
    %v564 = vunpack.c.l.b16 %v493
    %v565 = vunpack.c.l.b16 %v494
    %v566 = vunpack.c.l.b16 %v495
    %v567 = vunpack.c.l.b16 %v496
    %v568 = vunpack.c.l.b16 %v497
    %v569 = vunpack.c.l.b16 %v498
    %v570 = vunpack.c.l.b16 %v499
    %v571 = vunpack.c.l.b16 %v500
    %v572 = vunpack.c.l.b16 %v501
    %v573 = vunpack.c.l.b16 %v502
    %v574 = vunpack.c.l.b16 %v503
    %v575 = vunpack.c.l.b16 %v504
    %v576 = vunpack.c.l.b16 %v505
    %v577 = vunpack.c.l.b16 %v506
    %v578 = vunpack.c.l.b16 %v507
    %v579 = vunpack.c.l.b16 %v508
    %v580 = vunpack.c.l.b16 %v509
    %v581 = vunpack.c.l.b16 %v510
    %v582 = vunpack.c.l.b16 %v511
    %v583 = vunpack.c.l.b16 %v512
    %v584 = vunpack.c.l.b16 %v513
    %v585 = vunpack.c.l.b16 %v514
    %v586 = vunpack.c.l.b16 %v515
    %v587 = vunpack.c.l.b16 %v516
    %v588 = vunpack.c.l.b16 %v517
    %v589 = vpack.c.b16 %v558, %v557
    %v590 = vpack.c.b16 %v560, %v559
    %v591 = vpack.c.b16 %v562, %v561
    %v592 = vpack.c.b16 %v564, %v563
    %v593 = vpack.c.b16 %v566, %v565
    %v594 = vpack.c.b16 %v568, %v567
    %v595 = vpack.c.b16 %v570, %v569
    %v596 = vpack.c.b16 %v572, %v571
    %v597 = vpack.c.b16 %v574, %v573
    %v598 = vpack.c.b16 %v576, %v575
    %v599 = vpack.c.b16 %v578, %v577
    %v600 = vpack.c.b16 %v580, %v579
    %v601 = vpack.c.b16 %v582, %v581
    %v602 = vpack.c.b16 %v584, %v583
    %v603 = vpack.c.b16 %v586, %v585
    %v604 = vpack.c.b16 %v588, %v587
    %621 = vmatprep.subr.bf16.mxu0 0
    %622 = vmatpush1.bf16.msra.mxu0 %v596
    %623 = vmatprep.subr.bf16.mxu0 0
    %624 = vmatpush1.bf16.msra.mxu0 %v595
    %625 = vmatprep.subr.bf16.mxu0 0
    %626 = vmatpush1.bf16.msra.mxu0 %v594
    %627 = vmatprep.subr.bf16.mxu0 0
    %628 = vmatpush1.bf16.msra.mxu0 %v593
    %629 = vmatprep.subr.bf16.mxu0 0
    %630 = vmatpush1.bf16.msra.mxu0 %v592
    %631 = vmatprep.subr.bf16.mxu0 0
    %632 = vmatpush1.bf16.msra.mxu0 %v591
    %633 = vmatprep.subr.bf16.mxu0 0
    %634 = vmatpush1.bf16.msra.mxu0 %v590
    %635 = vmatprep.subr.bf16.mxu0 0
    %636 = vmatpush1.bf16.msra.mxu0 %v589
    %637 = vmatprep.subr.bf16.mxu0 0
    %638 = vmatpush2.bf16.msra.mxu0 %v604
    %639 = vmatprep.subr.bf16.mxu0 0
    %640 = vmatpush2.bf16.msra.mxu0 %v603
    %641 = vmatprep.subr.bf16.mxu0 0
    %642 = vmatpush2.bf16.msra.mxu0 %v602
    %643 = vmatprep.subr.bf16.mxu0 0
    %644 = vmatpush2.bf16.msra.mxu0 %v601
    %645 = vmatprep.subr.bf16.mxu0 0
    %646 = vmatpush2.bf16.msra.mxu0 %v600
    %647 = vmatprep.subr.bf16.mxu0 0
    %648 = vmatpush2.bf16.msra.mxu0 %v599
    %649 = vmatprep.subr.bf16.mxu0 0
    %650 = vmatpush2.bf16.msra.mxu0 %v598
    %651 = vmatprep.subr.bf16.mxu0 0
    %652 = vmatpush2.bf16.msra.mxu0 %v597
    %653 = vmatprep.mubr.bf16.mxu0 %v485
    %654 = vmatmul.mubr.bf16.gmra.mxu0 %v484
    %v655 = vpop.f32.mrf.mxu0
    %v656 = vadd.f32 %v523, %v655
    %v657 = vpop.f32.mrf.mxu0
    %v658 = vpop.f32.mrf.mxu0
    %v659 = vadd.f32 %v523, %v658
    %v660 = vpop.f32.mrf.mxu0
    %661 = vdwg.mxu0
    %v662 = vpack.c.bf16 %v659, %v656
    %v664 = vunpack.c.l.b16 %v662
    %v665 = vunpack.c.h.b16 %v662
    %v666 = vpack.c.b16 %v664, %v664
    %v667 = vpack.c.b16 %v665, %v665
    %670 = vst [vmem:[#allocation10] sm:$0xf] %v666
    %671 = vst [vmem:[#allocation10 + $0x4] sm:$0xf] %v667
    // Predicated region
    $region42: #{tpu_custom_call.1} parent=1 // pred_check
      _
    $region43: #{tpu_custom_call.1} parent=1 // pred_check_branch
      %673 = sbr.rel (0) target = $region45
    $region44: #{tpu_custom_call.1} parent=1 // pred_region
      %s675 = ssub.s32 128, 128
      %676 = vsyncadd [#allocation4], %s675
      %s677 = sshll.u32 [#allocation10], 4
      %s678 = int_to_ptr.vmem [resolvable:$true] %s677
      %683 = dma.vmem_to_hbm [thread:$0]  %s678, 128, %s6, [#allocation4], 64, 64, 4
    $region45: #{tpu_custom_call.1} parent=1 // pred_fallthru
      _
    // Predicated region
    $region46: #{tpu_custom_call.1} parent=1 // pred_check
      _
    $region47: #{tpu_custom_call.1} parent=1 // pred_check_branch
      %685 = sbr.rel (0) target = $region49
    $region48: #{tpu_custom_call.1} parent=1 // pred_region
      %686 = dma.done [#allocation4], 128
    $region49: #{tpu_custom_call.1} parent=1 // pred_fallthru
      _
    %687 = vsyncpa [#allocation3], 1
    %688 = vsyncpa [#allocation6], 1
    %689 = vsyncpa [#allocation9], 1
    %690 = vsyncpa [#allocation4], 1

</llo_original>
